<compile_context>
chip_gen: v7x
topology: tpu7x:2x2x1
jax: 0.10.0
libtpu: 0.0.40
codegen_flags: <defaults>
</compile_context>

<pallas_src>
import jax
import jax.numpy as jnp
from jax.experimental import pallas as pl
from jax.experimental.pallas import tpu as pltpu


def _mhcls_kernel(x_ref, w_ref, b_ref, oi_ref, os_ref):
    # x_ref: (TN, C, S)  w_ref: (C, K) with 1/S folded in  b_ref: (1, K)
    # oi_ref: (TN, Ki)   os_ref: (TN, Ks)
    # Pool: sum over the last (lane) axis; upcast to f32 first (handles bf16
    # inputs on v5e/v6e/v7x identically; no-op for f32 inputs).
    pooled = jnp.sum(x_ref[...].astype(jnp.float32), axis=-1)          # (TN, C)
    # One fused MXU matmul for every classifier head, f32 accumulation.
    out = jnp.dot(pooled, w_ref[...],
                  preferred_element_type=jnp.float32) + b_ref[...]      # (TN, K)
    ki = oi_ref.shape[-1]
    # Free VMEM slices of the accumulator -> two outputs, no wrapper slicing.
    oi_ref[...] = out[:, :ki].astype(oi_ref.dtype)
    os_ref[...] = out[:, ki:].astype(os_ref.dtype)


def fuse_mhcls_params(w_invade, b_invade, w_surgery, b_surgery, spatial_size):
    """One-time (init / param-transform) fusion of all classifier heads.

    w_invade:  (num_heads, invade_classes, C)   b_invade:  (num_heads, invade_classes)
    w_surgery: (num_heads, surgery_classes, C)  b_surgery: (num_heads, surgery_classes)
    spatial_size: S = T*H*W the average pool reduces over.

    Returns w_all (C, K) with the 1/S pool scale folded in, and b_all (1, K),
    where K = num_heads*(invade_classes + surgery_classes).
    """
    nh, ic, C = w_invade.shape
    _, sc, _ = w_surgery.shape
    ki, ks = nh * ic, nh * sc
    wi = jnp.transpose(w_invade, (2, 0, 1)).reshape(C, ki)
    ws = jnp.transpose(w_surgery, (2, 0, 1)).reshape(C, ks)
    w_all = jnp.concatenate([wi, ws], axis=1) * (1.0 / float(spatial_size))
    b_all = jnp.concatenate([b_invade.reshape(1, ki),
                             b_surgery.reshape(1, ks)], axis=1)
    return w_all, b_all


def mhcls_forward(x, w_all, b_all, num_heads, invade_classes, surgery_classes):
    """x: (N, C, T, H, W) float32 or bfloat16; w_all/b_all from fuse_mhcls_params.

    Returns:
      pred_invade:  (N, num_heads, invade_classes)
      pred_surgery: (N, num_heads, surgery_classes)
    (pred_invade[:, h] == Linear_h(avgpool(x)), matching the PyTorch module.)
    """
    N, C, T, H, W = x.shape
    S = T * H * W
    x_r = x.reshape(N, C, S)                       # contiguous -> free reshape

    Ki = num_heads * invade_classes
    Ks = num_heads * surgery_classes
    K = Ki + Ks

    # N-tile sized for the smallest VMEM (v7x: 64 MiB physical / 32 MiB scoped
    # default): double-buffered input tile kept under ~8 MiB.
    elem = x.dtype.itemsize
    budget = 8 << 20
    per_row = C * S * elem * 2                     # 2 pipeline buffers
    tn = min(N, max(1, budget // per_row))
    if tn < N:
        tn = max(8, (tn // 8) * 8)                 # keep block sublane-friendly
    grid = (pl.cdiv(N, tn),)

    cost = pl.CostEstimate(
        flops=N * C * S + 2 * N * C * K + N * K,
        transcendentals=0,
        bytes_accessed=(x_r.size * elem
                        + (w_all.size + b_all.size) * 4
                        + N * K * 4),
    )

    out_i, out_s = pl.pallas_call(
        _mhcls_kernel,
        out_shape=(jax.ShapeDtypeStruct((N, Ki), jnp.float32),
                   jax.ShapeDtypeStruct((N, Ks), jnp.float32)),
        grid_spec=pltpu.PrefetchScalarGridSpec(
            num_scalar_prefetch=0,
            grid=grid,
            in_specs=[
                pl.BlockSpec((tn, C, S), lambda i: (i, 0, 0)),
                pl.BlockSpec((C, K), lambda i: (0, 0)),
                pl.BlockSpec((1, K), lambda i: (0, 0)),
            ],
            out_specs=[
                pl.BlockSpec((tn, Ki), lambda i: (i, 0)),
                pl.BlockSpec((tn, Ks), lambda i: (i, 0)),
            ],
        ),
        compiler_params=pltpu.CompilerParams(
            dimension_semantics=("parallel",)),    # both v7x TCs share N tiles
        cost_estimate=cost,
    )(x_r, w_all, b_all)

    pred_invade = out_i.reshape(N, num_heads, invade_classes)
    pred_surgery = out_s.reshape(N, num_heads, surgery_classes)
    return pred_invade, pred_surgery


if __name__ == "__main__":
    # Small, module-consistent shapes (C is fixed at 192 by the module).
    N, C, T, H, W = 2, 192, 2, 4, 4
    num_heads = 3
    invade_classes = 3
    surgery_classes = 4
    S = T * H * W

    key = jax.random.PRNGKey(0)
    kx, kwi, kbi, kws, kbs = jax.random.split(key, 5)

    x = jax.random.normal(kx, (N, C, T, H, W), dtype=jnp.float32)

    # nn.Linear default init: U(-1/sqrt(fan_in), 1/sqrt(fan_in)), fan_in = 192
    bound = 1.0 / (C ** 0.5)
    w_invade = jax.random.uniform(kwi, (num_heads, invade_classes, C),
                                  minval=-bound, maxval=bound, dtype=jnp.float32)
    b_invade = jax.random.uniform(kbi, (num_heads, invade_classes),
                                  minval=-bound, maxval=bound, dtype=jnp.float32)
    w_surgery = jax.random.uniform(kws, (num_heads, surgery_classes, C),
                                   minval=-bound, maxval=bound, dtype=jnp.float32)
    b_surgery = jax.random.uniform(kbs, (num_heads, surgery_classes),
                                   minval=-bound, maxval=bound, dtype=jnp.float32)

    # One-time param fusion (hoisted out of the per-forward path).
    w_all, b_all = fuse_mhcls_params(w_invade, b_invade, w_surgery, b_surgery, S)
    w_all = jax.block_until_ready(w_all)
    b_all = jax.block_until_ready(b_all)

    fwd = jax.jit(mhcls_forward, static_argnums=(3, 4, 5))
    pred_invade, pred_surgery = fwd(x, w_all, b_all,
                                    num_heads, invade_classes, surgery_classes)
    jax.block_until_ready(pred_invade)
    jax.block_until_ready(pred_surgery)

    # Reference check in plain JAX (matches the PyTorch forward).
    pooled_ref = jnp.mean(x.reshape(N, C, -1), axis=-1)
    assert pred_invade.shape == (N, num_heads, invade_classes)
    assert pred_surgery.shape == (N, num_heads, surgery_classes)
    for h in range(num_heads):
        ref_i = pooled_ref @ w_invade[h].T + b_invade[h]
        ref_s = pooled_ref @ w_surgery[h].T + b_surgery[h]
        assert jnp.allclose(pred_invade[:, h], ref_i, atol=1e-5), "invade head mismatch"
        assert jnp.allclose(pred_surgery[:, h], ref_s, atol=1e-5), "surgery head mismatch"

    print("KERNEL_OK")
</pallas_src>

<mosaic_0001>
module attributes {stable_mosaic.version = 11 : i64} {
  func.func @_mhcls_kernel(%arg0: i32, %arg1: memref<2x192x32xf32, #tpu.memory_space<vmem>>, %arg2: memref<192x21xf32, #tpu.memory_space<vmem>>, %arg3: memref<1x21xf32, #tpu.memory_space<vmem>>, %arg4: memref<2x9xf32, #tpu.memory_space<vmem>>, %arg5: memref<2x12xf32, #tpu.memory_space<vmem>>) attributes {dimension_semantics = [#tpu.dimension_semantics<parallel>], iteration_bounds = array<i64: 1>, scalar_prefetch = 0 : i64, scratch_operands = 0 : i64, tpu.core_type = #tpu.core_type<tc>, window_params = [{transform_indices = @transform_0, window_bounds = array<i64: 2, 192, 32>}, {pipeline_mode = #tpu.pipeline_mode<synchronous>, transform_indices = @transform_1, window_bounds = array<i64: 192, 21>}, {pipeline_mode = #tpu.pipeline_mode<synchronous>, transform_indices = @transform_2, window_bounds = array<i64: 1, 21>}, {transform_indices = @transform_3, window_bounds = array<i64: 2, 9>}, {transform_indices = @transform_4, window_bounds = array<i64: 2, 12>}]} {
    %c0 = arith.constant 0 : index
    %c0_0 = arith.constant 0 : index
    %c0_1 = arith.constant 0 : index
    %0 = vector.load %arg1[%c0, %c0_0, %c0_1] : memref<2x192x32xf32, #tpu.memory_space<vmem>>, vector<2x192x32xf32>
    %cst = arith.constant dense<0.000000e+00> : vector<2x192xf32>
    %1 = vector.multi_reduction <add>, %0, %cst [2] : vector<2x192x32xf32> to vector<2x192xf32>
    %c0_2 = arith.constant 0 : index
    %c0_3 = arith.constant 0 : index
    %2 = vector.load %arg2[%c0_2, %c0_3] : memref<192x21xf32, #tpu.memory_space<vmem>>, vector<192x21xf32>
    %cst_4 = arith.constant dense<0.000000e+00> : vector<2x21xf32>
    %3 = tpu.matmul %1, %2, %cst_4 {dimension_numbers = #tpu.dot_dimension_numbers<[1], [0], [0], [1], [0, 0, 1, 1], [], []>} : vector<2x192xf32>, vector<192x21xf32>, vector<2x21xf32> -> vector<2x21xf32>
    %c0_5 = arith.constant 0 : index
    %c0_6 = arith.constant 0 : index
    %4 = vector.load %arg3[%c0_5, %c0_6] : memref<1x21xf32, #tpu.memory_space<vmem>>, vector<1x21xf32>
    %5 = vector.broadcast %4 : vector<1x21xf32> to vector<2x21xf32>
    %6 = arith.addf %3, %5 : vector<2x21xf32>
    %7 = vector.extract_strided_slice %6 {offsets = [0, 0], sizes = [2, 9], strides = [1, 1]} : vector<2x21xf32> to vector<2x9xf32>
    %c0_7 = arith.constant 0 : index
    %c0_8 = arith.constant 0 : index
    %8 = vector.load %arg4[%c0_7, %c0_8] : memref<2x9xf32, #tpu.memory_space<vmem>>, vector<2x9xf32>
    tpu.vector_store %arg4[%c0_7, %c0_8], %7 {strides = array<i32>} : memref<2x9xf32, #tpu.memory_space<vmem>>, vector<2x9xf32>,
    %9 = vector.extract_strided_slice %6 {offsets = [0, 9], sizes = [2, 12], strides = [1, 1]} : vector<2x21xf32> to vector<2x12xf32>
    %c0_9 = arith.constant 0 : index
    %c0_10 = arith.constant 0 : index
    %10 = vector.load %arg5[%c0_9, %c0_10] : memref<2x12xf32, #tpu.memory_space<vmem>>, vector<2x12xf32>
    tpu.vector_store %arg5[%c0_9, %c0_10], %9 {strides = array<i32>} : memref<2x12xf32, #tpu.memory_space<vmem>>, vector<2x12xf32>,
    return
  }
  func.func @transform_0(%arg0: i32) -> (i32, i32, i32) {
    %c0_i32 = arith.constant 0 : i32
    %c0_i32_0 = arith.constant 0 : i32
    %c0_i32_1 = arith.constant 0 : i32
    return %arg0, %c0_i32, %c0_i32_0 : i32, i32, i32
  }
  func.func @transform_1(%arg0: i32) -> (i32, i32) {
    %c0_i32 = arith.constant 0 : i32
    %c0_i32_0 = arith.constant 0 : i32
    %c0_i32_1 = arith.constant 0 : i32
    return %c0_i32, %c0_i32_0 : i32, i32
  }
  func.func @transform_2(%arg0: i32) -> (i32, i32) {
    %c0_i32 = arith.constant 0 : i32
    %c0_i32_0 = arith.constant 0 : i32
    %c0_i32_1 = arith.constant 0 : i32
    return %c0_i32, %c0_i32_0 : i32, i32
  }
  func.func @transform_3(%arg0: i32) -> (i32, i32) {
    %c0_i32 = arith.constant 0 : i32
    %c0_i32_0 = arith.constant 0 : i32
    return %arg0, %c0_i32 : i32, i32
  }
  func.func @transform_4(%arg0: i32) -> (i32, i32) {
    %c0_i32 = arith.constant 0 : i32
    %c0_i32_0 = arith.constant 0 : i32
    return %arg0, %c0_i32 : i32, i32
  }
}

</mosaic_0001>

<llo_original>
// kernel: mhcls_forward.1
$region0: #{mhcls_forward.1}
  #allocation0 [shape = 'u32[]', space=smem, size = 0x4, offset = 0x4, fixed_abs, tag = 'smem constant byte address 0x4 - core index']
  #allocation1 [shape = 'u32[144,128]{1,0:T(1,128)}', space=vmem, size = 0x12000, scoped, tag = 'internal scratch']
  %s0 = inlined_call_operand.vmem [shape: f32[2,192,32], index: 0, kind: input, shape index: {}]
  %s1 = inlined_call_operand.vmem [shape: f32[192,21], index: 1, kind: input, shape index: {}]
  %s2 = inlined_call_operand.vmem [shape: f32[1,21], index: 2, kind: input, shape index: {}]
  %s3 = inlined_call_operand.vmem [shape: f32[2,9], index: 3, kind: output, shape index: {0}]
  %s4 = inlined_call_operand.vmem [shape: f32[2,12], index: 4, kind: output, shape index: {1}]
  %5 = xla_tuple %s3, %s4
  %s6 = sld [smem:[#allocation0]]
  $region30: #{mhcls_forward.1} parent=0
    _
  %s8 = ssub.s32 1, %s6
  %s9 = scalar_select 0, %s8, %s6
  // Predicated region
  $region2: #{mhcls_forward.1} parent=0 // pred_check
    _
  $region3: #{mhcls_forward.1} parent=0 // pred_check_branch
    %11 = sbr.rel (0) target = $region5
  $region4: #{mhcls_forward.1} parent=0 // pred_region
    _
  $region5: #{mhcls_forward.1} parent=0 // pred_fallthru
    _
  // Predicated region
  $region6: #{mhcls_forward.1} parent=0 // pred_check
    _
  $region7: #{mhcls_forward.1} parent=0 // pred_check_branch
    %13 = sbr.rel (0) target = $region9
  $region8: #{mhcls_forward.1} parent=0 // pred_region
    _
  $region9: #{mhcls_forward.1} parent=0 // pred_fallthru
    _
  // Predicated region
  $region10: #{mhcls_forward.1} parent=0 // pred_check
    _
  $region11: #{mhcls_forward.1} parent=0 // pred_check_branch
    %15 = sbr.rel (0) target = $region13
  $region12: #{mhcls_forward.1} parent=0 // pred_region
    _
  $region13: #{mhcls_forward.1} parent=0 // pred_fallthru
    _
  %v16 = vld [vmem:[%s0] sm:$0xff]
  %v17 = vld [vmem:[%s0 + $0x8] sm:$0xff]
  %v18 = vld [vmem:[%s0 + $0x10] sm:$0xff]
  %v19 = vld [vmem:[%s0 + $0x18] sm:$0xff]
  %v20 = vld [vmem:[%s0 + $0x20] sm:$0xff]
  %v21 = vld [vmem:[%s0 + $0x28] sm:$0xff]
  %v22 = vld [vmem:[%s0 + $0x30] sm:$0xff]
  %v23 = vld [vmem:[%s0 + $0x38] sm:$0xff]
  %v24 = vld [vmem:[%s0 + $0x40] sm:$0xff]
  %v25 = vld [vmem:[%s0 + $0x48] sm:$0xff]
  %v26 = vld [vmem:[%s0 + $0x50] sm:$0xff]
  %v27 = vld [vmem:[%s0 + $0x58] sm:$0xff]
  %v28 = vld [vmem:[%s0 + $0x60] sm:$0xff]
  %v29 = vld [vmem:[%s0 + $0x68] sm:$0xff]
  %v30 = vld [vmem:[%s0 + $0x70] sm:$0xff]
  %v31 = vld [vmem:[%s0 + $0x78] sm:$0xff]
  %v32 = vld [vmem:[%s0 + $0x80] sm:$0xff]
  %v33 = vld [vmem:[%s0 + $0x88] sm:$0xff]
  %v34 = vld [vmem:[%s0 + $0x90] sm:$0xff]
  %v35 = vld [vmem:[%s0 + $0x98] sm:$0xff]
  %v36 = vld [vmem:[%s0 + $0xa0] sm:$0xff]
  %v37 = vld [vmem:[%s0 + $0xa8] sm:$0xff]
  %v38 = vld [vmem:[%s0 + $0xb0] sm:$0xff]
  %v39 = vld [vmem:[%s0 + $0xb8] sm:$0xff]
  %v40 = vld [vmem:[%s0 + $0xc0] sm:$0xff]
  %v41 = vld [vmem:[%s0 + $0xc8] sm:$0xff]
  %v42 = vld [vmem:[%s0 + $0xd0] sm:$0xff]
  %v43 = vld [vmem:[%s0 + $0xd8] sm:$0xff]
  %v44 = vld [vmem:[%s0 + $0xe0] sm:$0xff]
  %v45 = vld [vmem:[%s0 + $0xe8] sm:$0xff]
  %v46 = vld [vmem:[%s0 + $0xf0] sm:$0xff]
  %v47 = vld [vmem:[%s0 + $0xf8] sm:$0xff]
  %v48 = vld [vmem:[%s0 + $0x100] sm:$0xff]
  %v49 = vld [vmem:[%s0 + $0x108] sm:$0xff]
  %v50 = vld [vmem:[%s0 + $0x110] sm:$0xff]
  %v51 = vld [vmem:[%s0 + $0x118] sm:$0xff]
  %v52 = vld [vmem:[%s0 + $0x120] sm:$0xff]
  %v53 = vld [vmem:[%s0 + $0x128] sm:$0xff]
  %v54 = vld [vmem:[%s0 + $0x130] sm:$0xff]
  %v55 = vld [vmem:[%s0 + $0x138] sm:$0xff]
  %v56 = vld [vmem:[%s0 + $0x140] sm:$0xff]
  %v57 = vld [vmem:[%s0 + $0x148] sm:$0xff]
  %v58 = vld [vmem:[%s0 + $0x150] sm:$0xff]
  %v59 = vld [vmem:[%s0 + $0x158] sm:$0xff]
  %v60 = vld [vmem:[%s0 + $0x160] sm:$0xff]
  %v61 = vld [vmem:[%s0 + $0x168] sm:$0xff]
  %v62 = vld [vmem:[%s0 + $0x170] sm:$0xff]
  %v63 = vld [vmem:[%s0 + $0x178] sm:$0xff]
  %vm64 = vcmask 261120
  %v65 = vsel %vm64, %v16, 0.0
  %66 = vadd.xlane.f32.xlu0 %v65
  %v67 = vpop.xlane.xlu0 %66
  %v68 = vsel %vm64, %v17, 0.0
  %69 = vadd.xlane.f32.xlu0 %v68
  %v70 = vpop.xlane.xlu0 %69
  %v71 = vsel %vm64, %v18, 0.0
  %72 = vadd.xlane.f32.xlu0 %v71
  %v73 = vpop.xlane.xlu0 %72
  %v74 = vsel %vm64, %v19, 0.0
  %75 = vadd.xlane.f32.xlu0 %v74
  %v76 = vpop.xlane.xlu0 %75
  %v77 = vsel %vm64, %v20, 0.0
  %78 = vadd.xlane.f32.xlu0 %v77
  %v79 = vpop.xlane.xlu0 %78
  %v80 = vsel %vm64, %v21, 0.0
  %81 = vadd.xlane.f32.xlu0 %v80
  %v82 = vpop.xlane.xlu0 %81
  %v83 = vsel %vm64, %v22, 0.0
  %84 = vadd.xlane.f32.xlu0 %v83
  %v85 = vpop.xlane.xlu0 %84
  %v86 = vsel %vm64, %v23, 0.0
  %87 = vadd.xlane.f32.xlu0 %v86
  %v88 = vpop.xlane.xlu0 %87
  %v89 = vsel %vm64, %v24, 0.0
  %90 = vadd.xlane.f32.xlu0 %v89
  %v91 = vpop.xlane.xlu0 %90
  %v92 = vsel %vm64, %v25, 0.0
  %93 = vadd.xlane.f32.xlu0 %v92
  %v94 = vpop.xlane.xlu0 %93
  %v95 = vsel %vm64, %v26, 0.0
  %96 = vadd.xlane.f32.xlu0 %v95
  %v97 = vpop.xlane.xlu0 %96
  %v98 = vsel %vm64, %v27, 0.0
  %99 = vadd.xlane.f32.xlu0 %v98
  %v100 = vpop.xlane.xlu0 %99
  %v101 = vsel %vm64, %v28, 0.0
  %102 = vadd.xlane.f32.xlu0 %v101
  %v103 = vpop.xlane.xlu0 %102
  %v104 = vsel %vm64, %v29, 0.0
  %105 = vadd.xlane.f32.xlu0 %v104
  %v106 = vpop.xlane.xlu0 %105
  %v107 = vsel %vm64, %v30, 0.0
  %108 = vadd.xlane.f32.xlu0 %v107
  %v109 = vpop.xlane.xlu0 %108
  %v110 = vsel %vm64, %v31, 0.0
  %111 = vadd.xlane.f32.xlu0 %v110
  %v112 = vpop.xlane.xlu0 %111
  %v113 = vsel %vm64, %v32, 0.0
  %114 = vadd.xlane.f32.xlu0 %v113
  %v115 = vpop.xlane.xlu0 %114
  %v116 = vsel %vm64, %v33, 0.0
  %117 = vadd.xlane.f32.xlu0 %v116
  %v118 = vpop.xlane.xlu0 %117
  %v119 = vsel %vm64, %v34, 0.0
  %120 = vadd.xlane.f32.xlu0 %v119
  %v121 = vpop.xlane.xlu0 %120
  %v122 = vsel %vm64, %v35, 0.0
  %123 = vadd.xlane.f32.xlu0 %v122
  %v124 = vpop.xlane.xlu0 %123
  %v125 = vsel %vm64, %v36, 0.0
  %126 = vadd.xlane.f32.xlu0 %v125
  %v127 = vpop.xlane.xlu0 %126
  %v128 = vsel %vm64, %v37, 0.0
  %129 = vadd.xlane.f32.xlu0 %v128
  %v130 = vpop.xlane.xlu0 %129
  %v131 = vsel %vm64, %v38, 0.0
  %132 = vadd.xlane.f32.xlu0 %v131
  %v133 = vpop.xlane.xlu0 %132
  %v134 = vsel %vm64, %v39, 0.0
  %135 = vadd.xlane.f32.xlu0 %v134
  %v136 = vpop.xlane.xlu0 %135
  %v137 = vsel %vm64, %v40, 0.0
  %138 = vadd.xlane.f32.xlu0 %v137
  %v139 = vpop.xlane.xlu0 %138
  %v140 = vsel %vm64, %v41, 0.0
  %141 = vadd.xlane.f32.xlu0 %v140
  %v142 = vpop.xlane.xlu0 %141
  %v143 = vsel %vm64, %v42, 0.0
  %144 = vadd.xlane.f32.xlu0 %v143
  %v145 = vpop.xlane.xlu0 %144
  %v146 = vsel %vm64, %v43, 0.0
  %147 = vadd.xlane.f32.xlu0 %v146
  %v148 = vpop.xlane.xlu0 %147
  %v149 = vsel %vm64, %v44, 0.0
  %150 = vadd.xlane.f32.xlu0 %v149
  %v151 = vpop.xlane.xlu0 %150
  %v152 = vsel %vm64, %v45, 0.0
  %153 = vadd.xlane.f32.xlu0 %v152
  %v154 = vpop.xlane.xlu0 %153
  %v155 = vsel %vm64, %v46, 0.0
  %156 = vadd.xlane.f32.xlu0 %v155
  %v157 = vpop.xlane.xlu0 %156
  %v158 = vsel %vm64, %v47, 0.0
  %159 = vadd.xlane.f32.xlu0 %v158
  %v160 = vpop.xlane.xlu0 %159
  %v161 = vsel %vm64, %v48, 0.0
  %162 = vadd.xlane.f32.xlu0 %v161
  %v163 = vpop.xlane.xlu0 %162
  %v164 = vsel %vm64, %v49, 0.0
  %165 = vadd.xlane.f32.xlu0 %v164
  %v166 = vpop.xlane.xlu0 %165
  %v167 = vsel %vm64, %v50, 0.0
  %168 = vadd.xlane.f32.xlu0 %v167
  %v169 = vpop.xlane.xlu0 %168
  %v170 = vsel %vm64, %v51, 0.0
  %171 = vadd.xlane.f32.xlu0 %v170
  %v172 = vpop.xlane.xlu0 %171
  %v173 = vsel %vm64, %v52, 0.0
  %174 = vadd.xlane.f32.xlu0 %v173
  %v175 = vpop.xlane.xlu0 %174
  %v176 = vsel %vm64, %v53, 0.0
  %177 = vadd.xlane.f32.xlu0 %v176
  %v178 = vpop.xlane.xlu0 %177
  %v179 = vsel %vm64, %v54, 0.0
  %180 = vadd.xlane.f32.xlu0 %v179
  %v181 = vpop.xlane.xlu0 %180
  %v182 = vsel %vm64, %v55, 0.0
  %183 = vadd.xlane.f32.xlu0 %v182
  %v184 = vpop.xlane.xlu0 %183
  %v185 = vsel %vm64, %v56, 0.0
  %186 = vadd.xlane.f32.xlu0 %v185
  %v187 = vpop.xlane.xlu0 %186
  %v188 = vsel %vm64, %v57, 0.0
  %189 = vadd.xlane.f32.xlu0 %v188
  %v190 = vpop.xlane.xlu0 %189
  %v191 = vsel %vm64, %v58, 0.0
  %192 = vadd.xlane.f32.xlu0 %v191
  %v193 = vpop.xlane.xlu0 %192
  %v194 = vsel %vm64, %v59, 0.0
  %195 = vadd.xlane.f32.xlu0 %v194
  %v196 = vpop.xlane.xlu0 %195
  %v197 = vsel %vm64, %v60, 0.0
  %198 = vadd.xlane.f32.xlu0 %v197
  %v199 = vpop.xlane.xlu0 %198
  %v200 = vsel %vm64, %v61, 0.0
  %201 = vadd.xlane.f32.xlu0 %v200
  %v202 = vpop.xlane.xlu0 %201
  %v203 = vsel %vm64, %v62, 0.0
  %204 = vadd.xlane.f32.xlu0 %v203
  %v205 = vpop.xlane.xlu0 %204
  %v206 = vsel %vm64, %v63, 0.0
  %207 = vadd.xlane.f32.xlu0 %v206
  %v208 = vpop.xlane.xlu0 %207
  %v209 = vld [vmem:[%s1] sm:$0xff]
  %v210 = vld [vmem:[%s1 + $0x8] sm:$0xff]
  %v211 = vld [vmem:[%s1 + $0x10] sm:$0xff]
  %v212 = vld [vmem:[%s1 + $0x18] sm:$0xff]
  %v213 = vld [vmem:[%s1 + $0x20] sm:$0xff]
  %v214 = vld [vmem:[%s1 + $0x28] sm:$0xff]
  %v215 = vld [vmem:[%s1 + $0x30] sm:$0xff]
  %v216 = vld [vmem:[%s1 + $0x38] sm:$0xff]
  %v217 = vld [vmem:[%s1 + $0x40] sm:$0xff]
  %v218 = vld [vmem:[%s1 + $0x48] sm:$0xff]
  %v219 = vld [vmem:[%s1 + $0x50] sm:$0xff]
  %v220 = vld [vmem:[%s1 + $0x58] sm:$0xff]
  %v221 = vld [vmem:[%s1 + $0x60] sm:$0xff]
  %v222 = vld [vmem:[%s1 + $0x68] sm:$0xff]
  %v223 = vld [vmem:[%s1 + $0x70] sm:$0xff]
  %v224 = vld [vmem:[%s1 + $0x78] sm:$0xff]
  %v225 = vld [vmem:[%s1 + $0x80] sm:$0xff]
  %v226 = vld [vmem:[%s1 + $0x88] sm:$0xff]
  %v227 = vld [vmem:[%s1 + $0x90] sm:$0xff]
  %v228 = vld [vmem:[%s1 + $0x98] sm:$0xff]
  %v229 = vld [vmem:[%s1 + $0xa0] sm:$0xff]
  %v230 = vld [vmem:[%s1 + $0xa8] sm:$0xff]
  %v231 = vld [vmem:[%s1 + $0xb0] sm:$0xff]
  %v232 = vld [vmem:[%s1 + $0xb8] sm:$0xff]
  %v233 = vld [vmem:[%s2] sm:$0x1]
  %v235 = vlaneseq
  %v236 = vshrl.u32 %v235, 7
  %v237 = vsub.s32 0, %v236
  %v238 = vrot.slane %v233, %v237
  %v288 = vlaneseq
  %v289 = vand.u32 %v288, 127
  %v290 = vlaneseq
  %v291 = vshrl.u32 %v290, 7
  %v292 = vsub.s32 %v289, %v291
  %v293 = vrot.slane %v67, %v292
  %v294 = vadd.s32 %v289, 4294967288
  %v295 = vlaneseq
  %v296 = vshrl.u32 %v295, 7
  %v297 = vsub.s32 %v294, %v296
  %v298 = vrot.slane %v70, %v297
  %vm299 = vcmask 130112
  %v300 = vsel %vm299, %v298, %v293
  %v301 = vadd.s32 %v289, 4294967280
  %v302 = vlaneseq
  %v303 = vshrl.u32 %v302, 7
  %v304 = vsub.s32 %v301, %v303
  %v305 = vrot.slane %v73, %v304
  %vm306 = vcmask 195712
  %v307 = vsel %vm306, %v305, %v300
  %v308 = vadd.s32 %v289, 4294967272
  %v309 = vlaneseq
  %v310 = vshrl.u32 %v309, 7
  %v311 = vsub.s32 %v308, %v310
  %v312 = vrot.slane %v76, %v311
  %vm313 = vcmask 261312
  %v314 = vsel %vm313, %v312, %v307
  %v315 = vadd.s32 %v289, 4294967264
  %v316 = vlaneseq
  %v317 = vshrl.u32 %v316, 7
  %v318 = vsub.s32 %v315, %v317
  %v319 = vrot.slane %v79, %v318
  %vm320 = vcmask 326912
  %v321 = vsel %vm320, %v319, %v314
  %v322 = vadd.s32 %v289, 4294967256
  %v323 = vlaneseq
  %v324 = vshrl.u32 %v323, 7
  %v325 = vsub.s32 %v322, %v324
  %v326 = vrot.slane %v82, %v325
  %vm327 = vcmask 392512
  %v328 = vsel %vm327, %v326, %v321
  %v329 = vadd.s32 %v289, 4294967248
  %v330 = vlaneseq
  %v331 = vshrl.u32 %v330, 7
  %v332 = vsub.s32 %v329, %v331
  %v333 = vrot.slane %v85, %v332
  %vm334 = vcmask 458112
  %v335 = vsel %vm334, %v333, %v328
  %v336 = vadd.s32 %v289, 4294967240
  %v337 = vlaneseq
  %v338 = vshrl.u32 %v337, 7
  %v339 = vsub.s32 %v336, %v338
  %v340 = vrot.slane %v88, %v339
  %vm341 = vcmask 523712
  %v342 = vsel %vm341, %v340, %v335
  %v343 = vadd.s32 %v289, 4294967232
  %v344 = vlaneseq
  %v345 = vshrl.u32 %v344, 7
  %v346 = vsub.s32 %v343, %v345
  %v347 = vrot.slane %v91, %v346
  %vm348 = vcmask 589312
  %v349 = vsel %vm348, %v347, %v342
  %v350 = vadd.s32 %v289, 4294967224
  %v351 = vlaneseq
  %v352 = vshrl.u32 %v351, 7
  %v353 = vsub.s32 %v350, %v352
  %v354 = vrot.slane %v94, %v353
  %vm355 = vcmask 654912
  %v356 = vsel %vm355, %v354, %v349
  %v357 = vadd.s32 %v289, 4294967216
  %v358 = vlaneseq
  %v359 = vshrl.u32 %v358, 7
  %v360 = vsub.s32 %v357, %v359
  %v361 = vrot.slane %v97, %v360
  %vm362 = vcmask 720512
  %v363 = vsel %vm362, %v361, %v356
  %v364 = vadd.s32 %v289, 4294967208
  %v365 = vlaneseq
  %v366 = vshrl.u32 %v365, 7
  %v367 = vsub.s32 %v364, %v366
  %v368 = vrot.slane %v100, %v367
  %vm369 = vcmask 786112
  %v370 = vsel %vm369, %v368, %v363
  %v371 = vadd.s32 %v289, 4294967200
  %v372 = vlaneseq
  %v373 = vshrl.u32 %v372, 7
  %v374 = vsub.s32 %v371, %v373
  %v375 = vrot.slane %v103, %v374
  %vm376 = vcmask 851712
  %v377 = vsel %vm376, %v375, %v370
  %v378 = vadd.s32 %v289, 4294967192
  %v379 = vlaneseq
  %v380 = vshrl.u32 %v379, 7
  %v381 = vsub.s32 %v378, %v380
  %v382 = vrot.slane %v106, %v381
  %vm383 = vcmask 917312
  %v384 = vsel %vm383, %v382, %v377
  %v385 = vadd.s32 %v289, 4294967184
  %v386 = vlaneseq
  %v387 = vshrl.u32 %v386, 7
  %v388 = vsub.s32 %v385, %v387
  %v389 = vrot.slane %v109, %v388
  %vm390 = vcmask 982912
  %v391 = vsel %vm390, %v389, %v384
  %v392 = vadd.s32 %v289, 4294967176
  %v393 = vlaneseq
  %v394 = vshrl.u32 %v393, 7
  %v395 = vsub.s32 %v392, %v394
  %v396 = vrot.slane %v112, %v395
  %vm397 = vcmask 1048512
  %v398 = vsel %vm397, %v396, %v391
  %v399 = vlaneseq
  %v400 = vshrl.u32 %v399, 7
  %v401 = vsub.s32 %v289, %v400
  %v402 = vrot.slane %v115, %v401
  %v403 = vlaneseq
  %v404 = vshrl.u32 %v403, 7
  %v405 = vsub.s32 %v294, %v404
  %v406 = vrot.slane %v118, %v405
  %v407 = vsel %vm299, %v406, %v402
  %v408 = vlaneseq
  %v409 = vshrl.u32 %v408, 7
  %v410 = vsub.s32 %v301, %v409
  %v411 = vrot.slane %v121, %v410
  %v412 = vsel %vm306, %v411, %v407
  %v413 = vlaneseq
  %v414 = vshrl.u32 %v413, 7
  %v415 = vsub.s32 %v308, %v414
  %v416 = vrot.slane %v124, %v415
  %v417 = vsel %vm313, %v416, %v412
  %v418 = vlaneseq
  %v419 = vshrl.u32 %v418, 7
  %v420 = vsub.s32 %v315, %v419
  %v421 = vrot.slane %v127, %v420
  %v422 = vsel %vm320, %v421, %v417
  %v423 = vlaneseq
  %v424 = vshrl.u32 %v423, 7
  %v425 = vsub.s32 %v322, %v424
  %v426 = vrot.slane %v130, %v425
  %v427 = vsel %vm327, %v426, %v422
  %v428 = vlaneseq
  %v429 = vshrl.u32 %v428, 7
  %v430 = vsub.s32 %v329, %v429
  %v431 = vrot.slane %v133, %v430
  %v432 = vsel %vm334, %v431, %v427
  %v433 = vlaneseq
  %v434 = vshrl.u32 %v433, 7
  %v435 = vsub.s32 %v336, %v434
  %v436 = vrot.slane %v136, %v435
  %v437 = vsel %vm341, %v436, %v432
  %v438 = vlaneseq
  %v439 = vshrl.u32 %v438, 7
  %v440 = vsub.s32 %v289, %v439
  %v441 = vrot.slane %v139, %v440
  %v442 = vlaneseq
  %v443 = vshrl.u32 %v442, 7
  %v444 = vsub.s32 %v294, %v443
  %v445 = vrot.slane %v142, %v444
  %v446 = vsel %vm299, %v445, %v441
  %v447 = vlaneseq
  %v448 = vshrl.u32 %v447, 7
  %v449 = vsub.s32 %v301, %v448
  %v450 = vrot.slane %v145, %v449
  %v451 = vsel %vm306, %v450, %v446
  %v452 = vlaneseq
  %v453 = vshrl.u32 %v452, 7
  %v454 = vsub.s32 %v308, %v453
  %v455 = vrot.slane %v148, %v454
  %v456 = vsel %vm313, %v455, %v451
  %v457 = vlaneseq
  %v458 = vshrl.u32 %v457, 7
  %v459 = vsub.s32 %v315, %v458
  %v460 = vrot.slane %v151, %v459
  %v461 = vsel %vm320, %v460, %v456
  %v462 = vlaneseq
  %v463 = vshrl.u32 %v462, 7
  %v464 = vsub.s32 %v322, %v463
  %v465 = vrot.slane %v154, %v464
  %v466 = vsel %vm327, %v465, %v461
  %v467 = vlaneseq
  %v468 = vshrl.u32 %v467, 7
  %v469 = vsub.s32 %v329, %v468
  %v470 = vrot.slane %v157, %v469
  %v471 = vsel %vm334, %v470, %v466
  %v472 = vlaneseq
  %v473 = vshrl.u32 %v472, 7
  %v474 = vsub.s32 %v336, %v473
  %v475 = vrot.slane %v160, %v474
  %v476 = vsel %vm341, %v475, %v471
  %v477 = vlaneseq
  %v478 = vshrl.u32 %v477, 7
  %v479 = vsub.s32 %v343, %v478
  %v480 = vrot.slane %v163, %v479
  %v481 = vsel %vm348, %v480, %v476
  %v482 = vlaneseq
  %v483 = vshrl.u32 %v482, 7
  %v484 = vsub.s32 %v350, %v483
  %v485 = vrot.slane %v166, %v484
  %v486 = vsel %vm355, %v485, %v481
  %v487 = vlaneseq
  %v488 = vshrl.u32 %v487, 7
  %v489 = vsub.s32 %v357, %v488
  %v490 = vrot.slane %v169, %v489
  %v491 = vsel %vm362, %v490, %v486
  %v492 = vlaneseq
  %v493 = vshrl.u32 %v492, 7
  %v494 = vsub.s32 %v364, %v493
  %v495 = vrot.slane %v172, %v494
  %v496 = vsel %vm369, %v495, %v491
  %v497 = vlaneseq
  %v498 = vshrl.u32 %v497, 7
  %v499 = vsub.s32 %v371, %v498
  %v500 = vrot.slane %v175, %v499
  %v501 = vsel %vm376, %v500, %v496
  %v502 = vlaneseq
  %v503 = vshrl.u32 %v502, 7
  %v504 = vsub.s32 %v378, %v503
  %v505 = vrot.slane %v178, %v504
  %v506 = vsel %vm383, %v505, %v501
  %v507 = vlaneseq
  %v508 = vshrl.u32 %v507, 7
  %v509 = vsub.s32 %v385, %v508
  %v510 = vrot.slane %v181, %v509
  %v511 = vsel %vm390, %v510, %v506
  %v512 = vlaneseq
  %v513 = vshrl.u32 %v512, 7
  %v514 = vsub.s32 %v392, %v513
  %v515 = vrot.slane %v184, %v514
  %v516 = vsel %vm397, %v515, %v511
  %v517 = vlaneseq
  %v518 = vshrl.u32 %v517, 7
  %v519 = vsub.s32 %v289, %v518
  %v520 = vrot.slane %v187, %v519
  %v521 = vlaneseq
  %v522 = vshrl.u32 %v521, 7
  %v523 = vsub.s32 %v294, %v522
  %v524 = vrot.slane %v190, %v523
  %v525 = vsel %vm299, %v524, %v520
  %v526 = vlaneseq
  %v527 = vshrl.u32 %v526, 7
  %v528 = vsub.s32 %v301, %v527
  %v529 = vrot.slane %v193, %v528
  %v530 = vsel %vm306, %v529, %v525
  %v531 = vlaneseq
  %v532 = vshrl.u32 %v531, 7
  %v533 = vsub.s32 %v308, %v532
  %v534 = vrot.slane %v196, %v533
  %v535 = vsel %vm313, %v534, %v530
  %v536 = vlaneseq
  %v537 = vshrl.u32 %v536, 7
  %v538 = vsub.s32 %v315, %v537
  %v539 = vrot.slane %v199, %v538
  %v540 = vsel %vm320, %v539, %v535
  %v541 = vlaneseq
  %v542 = vshrl.u32 %v541, 7
  %v543 = vsub.s32 %v322, %v542
  %v544 = vrot.slane %v202, %v543
  %v545 = vsel %vm327, %v544, %v540
  %v546 = vlaneseq
  %v547 = vshrl.u32 %v546, 7
  %v548 = vsub.s32 %v329, %v547
  %v549 = vrot.slane %v205, %v548
  %v550 = vsel %vm334, %v549, %v545
  %v551 = vlaneseq
  %v552 = vshrl.u32 %v551, 7
  %v553 = vsub.s32 %v336, %v552
  %v554 = vrot.slane %v208, %v553
  %v555 = vsel %vm341, %v554, %v550
  %vm556 = vcmask 1041409
  %v557 = vsel %vm556, %v516, %v398
  %v558 = vsel %vm556, %v555, %v437
  %vm560 = vcmask 523264
  %v561 = vsel %vm560, %v558, 0
  %563 = vmatprep.subr.mxu0 0.0
  %564 = vmatpush1.msra.mxu0 %v209
  %565 = vmatprep.subr.mxu0 0.0
  %566 = vmatpush1.msra.mxu0 %v210
  %567 = vmatprep.subr.mxu0 0.0
  %568 = vmatpush1.msra.mxu0 %v211
  %569 = vmatprep.subr.mxu0 0.0
  %570 = vmatpush1.msra.mxu0 %v212
  %571 = vmatprep.subr.mxu0 0.0
  %572 = vmatpush1.msra.mxu0 %v213
  %573 = vmatprep.subr.mxu0 0.0
  %574 = vmatpush1.msra.mxu0 %v214
  %575 = vmatprep.subr.mxu0 0.0
  %576 = vmatpush1.msra.mxu0 %v215
  %577 = vmatprep.subr.mxu0 0.0
  %578 = vmatpush1.msra.mxu0 %v216
  %579 = vmatprep.subr.mxu0 0.0
  %580 = vmatpush1.msra.mxu0 %v217
  %581 = vmatprep.subr.mxu0 0.0
  %582 = vmatpush1.msra.mxu0 %v218
  %583 = vmatprep.subr.mxu0 0.0
  %584 = vmatpush1.msra.mxu0 %v219
  %585 = vmatprep.subr.mxu0 0.0
  %586 = vmatpush1.msra.mxu0 %v220
  %587 = vmatprep.subr.mxu0 0.0
  %588 = vmatpush1.msra.mxu0 %v221
  %589 = vmatprep.subr.mxu0 0.0
  %590 = vmatpush1.msra.mxu0 %v222
  %591 = vmatprep.subr.mxu0 0.0
  %592 = vmatpush1.msra.mxu0 %v223
  %593 = vmatprep.subr.mxu0 0.0
  %594 = vmatpush1.msra.mxu0 %v224
  %595 = vmatprep.subr.mxu0 0.0
  %596 = vmatpush1.msra.mxu0 %v225
  %597 = vmatprep.subr.mxu0 0.0
  %598 = vmatpush1.msra.mxu0 %v226
  %599 = vmatprep.subr.mxu0 0.0
  %600 = vmatpush1.msra.mxu0 %v227
  %601 = vmatprep.subr.mxu0 0.0
  %602 = vmatpush1.msra.mxu0 %v228
  %603 = vmatprep.subr.mxu0 0.0
  %604 = vmatpush1.msra.mxu0 %v229
  %605 = vmatprep.subr.mxu0 0.0
  %606 = vmatpush1.msra.mxu0 %v230
  %607 = vmatprep.subr.mxu0 0.0
  %608 = vmatpush1.msra.mxu0 %v231
  %609 = vmatprep.subr.mxu0 0.0
  %610 = vmatpush1.msra.mxu0 %v232
  %611 = vmatprep.subr.mxu0 0.0
  %612 = vmatpush1.msra.mxu0 0.0
  %613 = vmatprep.subr.mxu0 0.0
  %614 = vmatpush1.msra.mxu0 0.0
  %615 = vmatprep.subr.mxu0 0.0
  %616 = vmatpush1.msra.mxu0 0.0
  %617 = vmatprep.subr.mxu0 0.0
  %618 = vmatpush1.msra.mxu0 0.0
  %619 = vmatprep.subr.mxu0 0.0
  %620 = vmatpush1.msra.mxu0 0.0
  %621 = vmatprep.subr.mxu0 0.0
  %622 = vmatpush1.msra.mxu0 0.0
  %623 = vmatprep.subr.mxu0 0.0
  %624 = vmatpush1.msra.mxu0 0.0
  %625 = vmatprep.subr.mxu0 0.0
  %626 = vmatpush1.msra.mxu0 0.0
  %627 = vmatprep.mubr.f32.mxu0 %v561
  %628 = vmatmul.mubr.f32.gmra.mrb[0].mxu0 %v557
  %v629 = vpop.f32.mrb[0].mxu0
  %v630 = vadd.f32 %v238, %v629
  %v631 = vpop.f32.mrb[0].mxu0
  %632 = vdwg.mxu0
  %vm633 = vcmask 66560
  %634 = vst.msk [vmem:[%s3] sm:$0x3] %vm633, %v630
  %636 = vrot.lane.b32.xlu0 %v630, 119
  %v637 = vpop.permute.xlu0 %636
  %vm639 = vcmask 91136
  %640 = vst.msk [vmem:[%s4] sm:$0x3] %vm639, %v637
  // Predicated region
  $region14: #{mhcls_forward.1} parent=0 // pred_check
    _
  $region15: #{mhcls_forward.1} parent=0 // pred_check_branch
    %642 = sbr.rel (0) target = $region17
  $region16: #{mhcls_forward.1} parent=0 // pred_region
    _
  $region17: #{mhcls_forward.1} parent=0 // pred_fallthru
    _
  // Predicated region
  $region18: #{mhcls_forward.1} parent=0 // pred_check
    _
  $region19: #{mhcls_forward.1} parent=0 // pred_check_branch
    %644 = sbr.rel (0) target = $region21
  $region20: #{mhcls_forward.1} parent=0 // pred_region
    _
  $region21: #{mhcls_forward.1} parent=0 // pred_fallthru
    _
  // Predicated region
  $region22: #{mhcls_forward.1} parent=0 // pred_check
    _
  $region23: #{mhcls_forward.1} parent=0 // pred_check_branch
    %646 = sbr.rel (0) target = $region25
  $region24: #{mhcls_forward.1} parent=0 // pred_region
    _
  $region25: #{mhcls_forward.1} parent=0 // pred_fallthru
    _
  // Predicated region
  $region26: #{mhcls_forward.1} parent=0 // pred_check
    _
  $region27: #{mhcls_forward.1} parent=0 // pred_check_branch
    %648 = sbr.rel (0) target = $region29
  $region28: #{mhcls_forward.1} parent=0 // pred_region
    _
  $region29: #{mhcls_forward.1} parent=0 // pred_fallthru
    _

</llo_original>
